<compile_context>
chip_gen: v5e
topology: v5e:2x2
jax: 0.10.0
libtpu: 0.0.40
codegen_flags: <defaults>
</compile_context>

<pallas_src>
import jax
import jax.numpy as jnp
import numpy as np
from jax.experimental import pallas as pl
from jax.experimental.pallas import tpu as pltpu


def _generate_positional_encoding(sequence_length: int, encoding_dim: int) -> jnp.ndarray:
    """Exactly mirrors PositionalEncoding1D.generate_positional_encoding (numpy, f32)."""
    def angle(pos, i):
        return pos / np.power(10000, 2 * (i // 2) / encoding_dim)

    pos_encoding = np.fromfunction(angle, (sequence_length, encoding_dim), dtype=np.float32)
    pos_encoding[:, 0::2] = np.sin(pos_encoding[:, 0::2])
    pos_encoding[:, 1::2] = np.cos(pos_encoding[:, 1::2])
    # shape (1, sequence_length, encoding_dim), float32
    return jnp.asarray(pos_encoding, dtype=jnp.float32)[None, :, :]


def _add_pe_kernel(x_ref, pe_ref, o_ref):
    # x_ref / o_ref: (TB, TC) block of the flattened (B, S*E) slab.
    # pe_ref:        (1, TC) f32 block of the flattened PE table (broadcast over rows).
    x = x_ref[...].astype(jnp.float32)
    o_ref[...] = (x + pe_ref[...]).astype(o_ref.dtype)


def _vmem_capacity_bytes() -> int:
    """Physical VMEM of the attached chip; conservative 128 MiB fallback."""
    try:
        info = pltpu.get_tpu_info()
        cap = getattr(info, "vmem_capacity_bytes", None)
        if cap:
            return int(cap)
    except Exception:
        pass
    return 128 * 1024 * 1024  # v5e / v6e class


def _choose_tiles(B: int, SE: int, itemsize: int, target_bytes: int,
                  *, min_split_bytes: int = 1 << 20):
    """Pick (row_tile, col_tile) giving ~target_bytes per block, (8,128)-legal.

    Rules:
      * col tile is either the full flattened width SE or a multiple of 128.
      * row tile is either the full batch B or a multiple of the dtype-aware
        sublane pack (8 for 4-byte, 16 for 2-byte, 32 for 1-byte dtypes).
      * for inputs >= min_split_bytes, guarantee >=2 row blocks so both v7x
        TensorCores get work under megacore sharding.
    """
    LANE = 128
    sublane = max(8, 32 // max(1, itemsize))
    row_bytes = SE * itemsize
    total_bytes = B * row_bytes

    if row_bytes <= target_bytes:
        # Tile rows only; keep the full lane-dense flattened width.
        tb = max(1, target_bytes // row_bytes)
        if total_bytes >= min_split_bytes and B >= 2 * sublane:
            half = -(-B // 2)                              # cdiv(B, 2)
            half = -(-half // sublane) * sublane           # round up to sublane
            tb = min(tb, half)                             # >= 2 row blocks
        if tb >= B:
            return B, SE                                   # full dim -> always legal
        tb = max(sublane, (tb // sublane) * sublane)       # multiple of sublane
        tb = min(tb, B)                                    # == B only if full dim
        return tb, SE

    # Extremely wide rows: tile the flattened lane axis too (multiples of 128).
    tb = B if B <= sublane else sublane
    tc = max(LANE, (target_bytes // (tb * itemsize) // LANE) * LANE)
    tc = min(tc, SE)
    return tb, tc


def positional_encoding_1d(x: jnp.ndarray, pe: jnp.ndarray,
                           *, target_block_bytes: int | None = None,
                           min_pallas_bytes: int = 256 * 1024) -> jnp.ndarray:
    """x: (B, S, E); pe: (1, S, E) float32 -> (B, S, E) in x.dtype."""
    B, S, E = x.shape
    assert pe.shape == (1, S, E)
    pe = pe.astype(jnp.float32)       # table stays f32; cast/add happens in-kernel

    SE = S * E
    itemsize = jnp.dtype(x.dtype).itemsize
    total_bytes = B * SE * itemsize

    # Tiny inputs: dispatch + pipeline prologue dominates; XLA's fused add wins.
    if total_bytes < min_pallas_bytes:
        return (x.astype(jnp.float32) + pe).astype(x.dtype)

    vmem_cap = _vmem_capacity_bytes()
    if target_block_bytes is None:
        # v7x (64 MiB physical VMEM, ~3.2 TB/s HBM): bigger blocks amortize the
        # fixed per-step overhead.  v5e/v6e: 2 MiB already sits ~85% of roofline
        # and respects v5e's 16 MiB scoped-VMEM default.
        target_block_bytes = 4 * 1024 * 1024 if vmem_cap <= 64 * 1024 * 1024 else 2 * 1024 * 1024

    x2 = x.reshape(B, SE)             # lane-dense slab
    pe2 = pe.reshape(1, SE)

    tb, tc = _choose_tiles(B, SE, itemsize, target_block_bytes)
    n_rows = pl.cdiv(B, tb)
    n_cols = pl.cdiv(SE, tc)
    # Row axis innermost (fastest): the PE block index only depends on the
    # column tile, so Pallas keeps it resident across consecutive grid steps.
    grid = (n_cols, n_rows)

    # Double-buffered working set: x in + out blocks + the f32 PE slice.
    footprint = 4 * tb * tc * itemsize + 2 * tc * 4
    vmem_limit = max(16 * 1024 * 1024, footprint + 8 * 1024 * 1024)
    vmem_limit = min(vmem_limit, vmem_cap // 2)
    vmem_limit = max(vmem_limit, footprint + 2 * 1024 * 1024)
    vmem_limit = min(vmem_limit, vmem_cap)

    cost = pl.CostEstimate(
        flops=B * SE,
        transcendentals=0,
        bytes_accessed=2 * B * SE * itemsize + SE * 4,
    )

    out2 = pl.pallas_call(
        _add_pe_kernel,
        out_shape=jax.ShapeDtypeStruct((B, SE), x.dtype),
        grid_spec=pltpu.PrefetchScalarGridSpec(
            num_scalar_prefetch=0,
            grid=grid,
            in_specs=[
                pl.BlockSpec((tb, tc), lambda j, i: (i, j)),   # x tile
                pl.BlockSpec((1, tc), lambda j, i: (0, j)),    # pe: resident across rows
            ],
            out_specs=pl.BlockSpec((tb, tc), lambda j, i: (i, j)),
        ),
        compiler_params=pltpu.CompilerParams(
            dimension_semantics=("parallel", "parallel"),
            vmem_limit_bytes=int(vmem_limit),
        ),
        cost_estimate=cost,
    )(x2, pe2)

    return out2.reshape(B, S, E)


if __name__ == "__main__":
    key = jax.random.PRNGKey(0)

    # --- Small shape consistent with the module (f32), forced through Pallas ---
    batch, sequence_length, encoding_dim = 2, 8, 32
    x = jax.random.normal(key, (batch, sequence_length, encoding_dim), dtype=jnp.float32)
    pe = _generate_positional_encoding(sequence_length, encoding_dim)

    out = positional_encoding_1d(x, pe, min_pallas_bytes=0)   # exercise the kernel path
    out = jax.block_until_ready(out)

    ref = x + pe
    np.testing.assert_allclose(np.asarray(out), np.asarray(ref), rtol=1e-6, atol=1e-6)

    # --- bf16 input: f32 add in-kernel, cast back to bf16 (dtype-aware tiling) ---
    batch2, seq2, dim2 = 4, 64, 128
    key2 = jax.random.PRNGKey(0)
    xb = jax.random.normal(key2, (batch2, seq2, dim2), dtype=jnp.float32).astype(jnp.bfloat16)
    pe2 = _generate_positional_encoding(seq2, dim2)

    out_b = positional_encoding_1d(xb, pe2, min_pallas_bytes=0)
    out_b = jax.block_until_ready(out_b)

    ref_b = (xb.astype(jnp.float32) + pe2).astype(jnp.bfloat16)
    np.testing.assert_allclose(np.asarray(out_b, dtype=np.float32),
                               np.asarray(ref_b, dtype=np.float32),
                               rtol=1e-2, atol=1e-2)

    print("KERNEL_OK")
</pallas_src>

<mosaic_0001>
module attributes {stable_mosaic.version = 11 : i64} {
  func.func @_add_pe_kernel(%arg0: i32, %arg1: i32, %arg2: memref<2x256xf32, #tpu.memory_space<vmem>>, %arg3: memref<1x256xf32, #tpu.memory_space<vmem>>, %arg4: memref<2x256xf32, #tpu.memory_space<vmem>>) attributes {dimension_semantics = [#tpu.dimension_semantics<parallel>, #tpu.dimension_semantics<parallel>], iteration_bounds = array<i64: 1, 1>, scalar_prefetch = 0 : i64, scratch_operands = 0 : i64, tpu.core_type = #tpu.core_type<tc>, window_params = [{transform_indices = @transform_0, window_bounds = array<i64: 2, 256>}, {transform_indices = @transform_1, window_bounds = array<i64: 1, 256>}, {transform_indices = @transform_2, window_bounds = array<i64: 2, 256>}]} {
    %c0 = arith.constant 0 : index
    %c0_0 = arith.constant 0 : index
    %0 = vector.load %arg2[%c0, %c0_0] : memref<2x256xf32, #tpu.memory_space<vmem>>, vector<2x256xf32>
    %c0_1 = arith.constant 0 : index
    %c0_2 = arith.constant 0 : index
    %1 = vector.load %arg3[%c0_1, %c0_2] : memref<1x256xf32, #tpu.memory_space<vmem>>, vector<1x256xf32>
    %2 = vector.broadcast %1 : vector<1x256xf32> to vector<2x256xf32>
    %3 = arith.addf %0, %2 : vector<2x256xf32>
    %c0_3 = arith.constant 0 : index
    %c0_4 = arith.constant 0 : index
    %4 = vector.load %arg4[%c0_3, %c0_4] : memref<2x256xf32, #tpu.memory_space<vmem>>, vector<2x256xf32>
    tpu.vector_store %arg4[%c0_3, %c0_4], %3 {strides = array<i32>} : memref<2x256xf32, #tpu.memory_space<vmem>>, vector<2x256xf32>,
    return
  }
  func.func @transform_0(%arg0: i32, %arg1: i32) -> (i32, i32) {
    %c0_i32 = arith.constant 0 : i32
    return %arg1, %arg0 : i32, i32
  }
  func.func @transform_1(%arg0: i32, %arg1: i32) -> (i32, i32) {
    %c0_i32 = arith.constant 0 : i32
    %c0_i32_0 = arith.constant 0 : i32
    return %c0_i32, %arg0 : i32, i32
  }
  func.func @transform_2(%arg0: i32, %arg1: i32) -> (i32, i32) {
    %c0_i32 = arith.constant 0 : i32
    return %arg1, %arg0 : i32, i32
  }
}

</mosaic_0001>

<llo_original>
// kernel: tpu_custom_call.1
$region0: #{tpu_custom_call.1}
  #allocation0 [shape = 'u32[]', space=smem, size = 0x4, offset = 0x4, fixed_abs, tag = 'smem constant byte address 0x4 - core index']
  #allocation1 [shape = 'u32[72,128]{1,0:T(1,128)}', space=vmem, size = 0x9000, scoped, tag = 'internal scratch']
  %s0 = inlined_call_operand.hbm [shape: f32[2,256], index: 0, kind: input, shape index: {}]
  %s1 = inlined_call_operand.hbm [shape: f32[1,256], index: 1, kind: input, shape index: {}]
  %s2 = inlined_call_operand.hbm [shape: f32[2,256], index: 2, kind: output, shape index: {}]
  %s3 = sld [smem:[#allocation0]]
  $region26: #{tpu_custom_call.1} parent=0
    _
  %s5 = ssub.s32 1, %s3
  %s6 = scalar_select 0, %s5, %s3
  $region1: #{tpu_custom_call.1} parent=0
    #allocation2 [shape = 'u8[2048]{0}', space=vmem, size = 0x800, scoped, tag = 'input window, operand 0, single buffered']
    #allocation3 [shape = 's32[1]{0}', space=sflag, size = 0x4, scoped, tag = 'scoped memory for tpu_custom_call.1']
    #allocation4 [shape = 's32[1]{0}', space=sflag, size = 0x4, scoped, tag = 'scoped memory for tpu_custom_call.1']
    #allocation5 [shape = 'u8[1024]{0}', space=vmem, size = 0x400, scoped, tag = 'input window, operand 1, single buffered']
    #allocation6 [shape = 's32[1]{0}', space=sflag, size = 0x4, scoped, tag = 'scoped memory for tpu_custom_call.1']
    #allocation7 [shape = 'u8[2048]{0}', space=vmem, size = 0x800, scoped, tag = 'output window, operand 0, single buffered']
    %7 = vsyncpa [#allocation3], 0
    %8 = vsyncpa [#allocation6], 0
    %9 = vsyncpa [#allocation4], 0
    // Predicated region
    $region2: #{tpu_custom_call.1} parent=1 // pred_check
      _
    $region3: #{tpu_custom_call.1} parent=1 // pred_check_branch
      %11 = sbr.rel (0) target = $region5
    $region4: #{tpu_custom_call.1} parent=1 // pred_region
      %13 = vsyncadd [#allocation3], 0
      %s15 = sshll.u32 %s0, 4
      %s16 = int_to_ptr.hbm [resolvable:$true] %s15
      %s17 = sshll.u32 [#allocation2], 4
      %s18 = int_to_ptr.vmem [resolvable:$true] %s17
      %20 = dma.hbm_to_vmem [thread:$0]  %s16, 64, %s18, [#allocation3]
    $region5: #{tpu_custom_call.1} parent=1 // pred_fallthru
      _
    // Predicated region
    $region6: #{tpu_custom_call.1} parent=1 // pred_check
      _
    $region7: #{tpu_custom_call.1} parent=1 // pred_check_branch
      %22 = sbr.rel (0) target = $region9
    $region8: #{tpu_custom_call.1} parent=1 // pred_region
      %24 = vsyncadd [#allocation6], 0
      %s26 = sshll.u32 %s1, 4
      %s27 = int_to_ptr.hbm [resolvable:$true] %s26
      %s28 = sshll.u32 [#allocation5], 4
      %s29 = int_to_ptr.vmem [resolvable:$true] %s28
      %31 = dma.hbm_to_vmem [thread:$0]  %s27, 32, %s29, [#allocation6]
    $region9: #{tpu_custom_call.1} parent=1 // pred_fallthru
      _
    // Predicated region
    $region10: #{tpu_custom_call.1} parent=1 // pred_check
      _
    $region11: #{tpu_custom_call.1} parent=1 // pred_check_branch
      %33 = sbr.rel (0) target = $region13
    $region12: #{tpu_custom_call.1} parent=1 // pred_region
      %35 = dma.done [#allocation3], 64
    $region13: #{tpu_custom_call.1} parent=1 // pred_fallthru
      _
    // Predicated region
    $region14: #{tpu_custom_call.1} parent=1 // pred_check
      _
    $region15: #{tpu_custom_call.1} parent=1 // pred_check_branch
      %37 = sbr.rel (0) target = $region17
    $region16: #{tpu_custom_call.1} parent=1 // pred_region
      %39 = dma.done [#allocation6], 32
    $region17: #{tpu_custom_call.1} parent=1 // pred_fallthru
      _
    %v40 = vld [vmem:[#allocation2] sm:$0xf]
    %v41 = vld [vmem:[#allocation5] sm:$0x3]
    %v43 = vperm.slane %v41, 0
    %v44 = vperm.slane %v41, 1
    %v45 = vrot.slane %v44, 6
    %vm46 = vcmask 1041408
    %v47 = vsel %vm46, %v43, %v45
    %v49 = vadd.f32 %v40, %v47
    %50 = vst [vmem:[#allocation7] sm:$0xf] %v49
    // Predicated region
    $region18: #{tpu_custom_call.1} parent=1 // pred_check
      _
    $region19: #{tpu_custom_call.1} parent=1 // pred_check_branch
      %52 = sbr.rel (0) target = $region21
    $region20: #{tpu_custom_call.1} parent=1 // pred_region
      %54 = vsyncadd [#allocation4], 0
      %s56 = sshll.u32 [#allocation7], 4
      %s57 = int_to_ptr.vmem [resolvable:$true] %s56
      %s58 = sshll.u32 %s2, 4
      %s59 = int_to_ptr.hbm [resolvable:$true] %s58
      %61 = dma.vmem_to_hbm [thread:$0]  %s57, 64, %s59, [#allocation4]
    $region21: #{tpu_custom_call.1} parent=1 // pred_fallthru
      _
    // Predicated region
    $region22: #{tpu_custom_call.1} parent=1 // pred_check
      _
    $region23: #{tpu_custom_call.1} parent=1 // pred_check_branch
      %63 = sbr.rel (0) target = $region25
    $region24: #{tpu_custom_call.1} parent=1 // pred_region
      %65 = dma.done [#allocation4], 64
    $region25: #{tpu_custom_call.1} parent=1 // pred_fallthru
      _
    %66 = vsyncpa [#allocation3], 1
    %67 = vsyncpa [#allocation6], 1
    %68 = vsyncpa [#allocation4], 1

</llo_original>
